<compile_context>
chip_gen: v5e
topology: v5e:2x2
jax: 0.10.0
libtpu: 0.0.40
codegen_flags: <defaults>
</compile_context>

<pallas_src>
import functools

import jax
import jax.numpy as jnp
from jax import lax
from jax.experimental import pallas as pl
from jax.experimental.pallas import tpu as pltpu


NEG_INF = -1000000000.0  # matches torch masked_fill(mask == 0, -1e9)


# ---------------------------------------------------------------------------
# kernels
# ---------------------------------------------------------------------------
def _attn_kernel(*refs, inv_temperature, masked):
    """One grid step: G heads x one q tile against the full Lk axis.

    q_ref: (G, tq, D); k_ref/v_ref: (G, Lk, D); [bias_ref: (G, 1|tq, Lk) bf16]
    o_ref: (G, tq, D); a_ref: (G, tq, Lk)
    """
    if masked:
        q_ref, k_ref, v_ref, b_ref, o_ref, a_ref = refs
    else:
        q_ref, k_ref, v_ref, o_ref, a_ref = refs

    # Native-dtype MXU inputs, f32 accumulation. Fold 1/T into a single q scale.
    q = q_ref[...] * inv_temperature
    s = lax.dot_general(                         # (G, tq, Lk): contract D, batch G
        q, k_ref[...],
        dimension_numbers=(((2,), (2,)), ((0,), (0,))),
        preferred_element_type=jnp.float32)

    if masked:
        s = s + b_ref[...].astype(jnp.float32)   # additive bias: no VPU select

    # numerically-stabilized softmax along Lk (same result as F.softmax)
    s_max = jnp.max(s, axis=-1, keepdims=True)
    p = jnp.exp(s - s_max)
    denom = jnp.sum(p, axis=-1, keepdims=True)
    attn = p / denom                             # exact divide for parity

    out = lax.dot_general(                       # (G, tq, D)
        attn.astype(v_ref.dtype), v_ref[...],
        dimension_numbers=(((2,), (1,)), ((0,), (0,))),
        preferred_element_type=jnp.float32)

    o_ref[...] = out.astype(o_ref.dtype)
    a_ref[...] = attn.astype(a_ref.dtype)


def _flash_kernel(*refs, inv_temperature, masked, approx_recip):
    """Flash-style path (no attention-matrix output).

    Grid: (BH//G, Lq//tq, Lk//tk), kv axis last ("arbitrary").
    Online softmax with (scaled-q, m, l, acc) VMEM scratch accumulators.
    """
    if masked:
        q_ref, k_ref, v_ref, b_ref, o_ref, q_sc, m_sc, l_sc, acc_sc = refs
    else:
        q_ref, k_ref, v_ref, o_ref, q_sc, m_sc, l_sc, acc_sc = refs

    ki = pl.program_id(2)

    @pl.when(ki == 0)
    def _():
        # q block is resident across the whole kv axis -> scale it exactly once.
        q_sc[...] = (q_ref[...] * inv_temperature).astype(q_sc.dtype)
        m_sc[...] = jnp.full(m_sc.shape, -jnp.inf, dtype=m_sc.dtype)
        l_sc[...] = jnp.zeros(l_sc.shape, dtype=l_sc.dtype)
        acc_sc[...] = jnp.zeros(acc_sc.shape, dtype=acc_sc.dtype)

    s = lax.dot_general(                         # (G, tq, tk)
        q_sc[...], k_ref[...],
        dimension_numbers=(((2,), (2,)), ((0,), (0,))),
        preferred_element_type=jnp.float32)
    if masked:
        s = s + b_ref[...].astype(jnp.float32)

    m_prev = m_sc[...]
    m_new = jnp.maximum(m_prev, jnp.max(s, axis=-1, keepdims=True))
    alpha = jnp.exp(m_prev - m_new)
    p = jnp.exp(s - m_new)
    l_sc[...] = alpha * l_sc[...] + jnp.sum(p, axis=-1, keepdims=True)
    acc_sc[...] = alpha * acc_sc[...] + lax.dot_general(
        p.astype(v_ref.dtype), v_ref[...],
        dimension_numbers=(((2,), (1,)), ((0,), (0,))),
        preferred_element_type=jnp.float32)
    m_sc[...] = m_new

    @pl.when(ki == pl.num_programs(2) - 1)
    def _():
        if approx_recip:
            inv_l = pl.reciprocal(l_sc[...], approx=True)   # EUP slot, 16-bit out
            o_ref[...] = (acc_sc[...] * inv_l).astype(o_ref.dtype)
        else:
            o_ref[...] = (acc_sc[...] / l_sc[...]).astype(o_ref.dtype)


# ---------------------------------------------------------------------------
# sizing helpers (generation-aware)
# ---------------------------------------------------------------------------
def _round_up(x, m):
    return ((x + m - 1) // m) * m


def _pick_vmem_limit():
    """Scoped-VMEM request derived from the chip's physical VMEM."""
    cap = None
    try:
        info = pltpu.get_tpu_info()
        cap = int(getattr(info, "vmem_capacity_bytes", 0)) or None
    except Exception:
        cap = None
    if cap is None:
        cap = 64 * 1024 * 1024          # conservative: assume v7x-sized VMEM
    # ~55% of physical leaves headroom for compiler scratch / double-buffering:
    # ~70 MiB on v5e/v6e (128 MiB), ~35 MiB on v7x (64 MiB).
    return max(32 * 1024 * 1024, min(int(cap * 0.55), 80 * 1024 * 1024))


def _choose_row_tile(L, preferred, fits):
    """q-row tile: full extent when small enough, else a multiple of 8
    (preferring 128-multiples) whose padding waste stays under half a tile."""
    if L <= preferred and fits(L):
        return L
    top = max(8, min(preferred, L))
    cands = list(range((top // 128) * 128, 127, -128))
    cands += [t for t in (64, 32, 16, 8) if t <= top]
    if not cands:
        cands = [8]
    for t in cands:
        if fits(t) and 2 * (_round_up(L, t) - L) <= t:
            return t
    for t in cands:
        if fits(t):
            return t
    return cands[-1]


def _choose_kv_tile(L, preferred, fits):
    """kv tile for the flash path: full extent or a multiple of 128."""
    if L <= preferred and fits(L):
        return L
    top = (min(preferred, L) // 128) * 128
    if top < 128:
        return L
    cands = list(range(top, 127, -128))
    for t in cands:
        if fits(t) and 2 * (_round_up(L, t) - L) <= t:
            return t
    for t in cands:
        if fits(t):
            return t
    return 128


def _pick_group(BH, bytes_fn, budget, cap, parallel_rest):
    """Largest divisor G of BH within `cap` and the VMEM budget, preferring a G
    that keeps the parallel grid extent (BH//G * parallel_rest) even (v7x)."""
    best_any, best_even = 1, None
    for g in range(1, BH + 1):
        if BH % g:
            continue
        if g > cap or bytes_fn(g) > budget:
            break
        best_any = g
        if ((BH // g) * max(parallel_rest, 1)) % 2 == 0:
            best_even = g
    return best_even if best_even is not None else best_any


def _pad_to(x, axis, new_size, value=0.0):
    pad = new_size - x.shape[axis]
    if pad <= 0:
        return x
    widths = [(0, 0)] * x.ndim
    widths[axis] = (0, pad)
    return jnp.pad(x, widths, constant_values=value)


# ---------------------------------------------------------------------------
# wrapper
# ---------------------------------------------------------------------------
def scaled_dot_product_attention(q, k, v, temperature, mask=None,
                                 return_attn=True, attn_dtype=None,
                                 q_tile=None, kv_tile=None):
    """Pallas implementation of ScaledDotProductAttention.forward.

    q: [B, H, Lq, D], k/v: [B, H, Lk, D], mask broadcastable to [B, H, Lq, Lk].
    Returns (output [B, H, Lq, D], attn [B, H, Lq, Lk])  when return_attn=True,
            (output, None)                               when return_attn=False
            (flash path; never materializes the O(Lq*Lk) matrix in HBM).
    """
    B, H, Lq, D = q.shape
    Lk = k.shape[2]
    BH = B * H
    inv_t = 1.0 / float(temperature)
    in_isz = jnp.dtype(q.dtype).itemsize
    a_dtype = jnp.dtype(attn_dtype) if attn_dtype is not None else jnp.dtype(q.dtype)
    a_isz = a_dtype.itemsize

    vmem_limit = _pick_vmem_limit()
    budget = int(vmem_limit * 0.6)
    big_vmem = vmem_limit >= 64 * 1024 * 1024
    q_pref = int(q_tile) if q_tile else (512 if big_vmem else 256)
    kv_pref = int(kv_tile) if kv_tile else (2048 if big_vmem else 1024)

    qf = q.reshape(BH, Lq, D)
    kf = k.reshape(BH, Lk, D)
    vf = v.reshape(BH, Lk, D)

    # Additive mask bias (0 where attended, -1e9 where masked) in bf16.
    masked = mask is not None
    mq = 1
    bias = None
    if masked:
        m4 = jnp.asarray(mask)
        if m4.ndim < 4:
            m4 = m4.reshape((1,) * (4 - m4.ndim) + m4.shape)
        mq = m4.shape[2]
        if mq not in (1, Lq):
            raise ValueError("mask q-dimension must be 1 or Lq")
        m4 = jnp.broadcast_to(m4, (B, H, mq, Lk)).reshape(BH, mq, Lk)
        bias = jnp.where(m4 != 0, 0.0, NEG_INF).astype(jnp.bfloat16)

    # ------------------------- attn-returning path ---------------------------
    if return_attn:
        def step_bytes(G, tq):
            b = G * (4 * tq * D * in_isz          # q + o, double-buffered
                     + 4 * Lk * D * in_isz        # K + V, double-buffered
                     + 2 * tq * Lk * a_isz        # attn output tile, double-buffered
                     + 2 * tq * Lk * 4)           # f32 scores + exp intermediate
            if masked:
                rows = 1 if mq == 1 else tq
                b += G * 2 * rows * Lk * 2
            return b

        tq = _choose_row_tile(Lq, q_pref, lambda t: step_bytes(1, t) <= budget)
        Lq_pad = _round_up(Lq, tq)
        nq = Lq_pad // tq
        G = _pick_group(BH, lambda g: step_bytes(g, tq), budget,
                        cap=max(1, min(8, 512 // max(tq, 1))), parallel_rest=nq)
        nbh = BH // G

        qp = _pad_to(qf, 1, Lq_pad)
        bp = bias
        if masked and mq != 1:
            bp = _pad_to(bias, 1, Lq_pad)

        q_spec = pl.BlockSpec((G, tq, D), lambda b, qi: (b, qi, 0))
        k_spec = pl.BlockSpec((G, Lk, D), lambda b, qi: (b, 0, 0))
        v_spec = pl.BlockSpec((G, Lk, D), lambda b, qi: (b, 0, 0))
        o_spec = pl.BlockSpec((G, tq, D), lambda b, qi: (b, qi, 0))
        a_spec = pl.BlockSpec((G, tq, Lk), lambda b, qi: (b, qi, 0))

        in_specs = [q_spec, k_spec, v_spec]
        inputs = [qp, kf, vf]
        if masked:
            if mq == 1:
                in_specs.append(pl.BlockSpec((G, 1, Lk), lambda b, qi: (b, 0, 0)))
            else:
                in_specs.append(pl.BlockSpec((G, tq, Lk), lambda b, qi: (b, qi, 0)))
            inputs.append(bp)

        out_shapes = (
            jax.ShapeDtypeStruct((BH, Lq_pad, D), q.dtype),
            jax.ShapeDtypeStruct((BH, Lq_pad, Lk), a_dtype),
        )
        out, attn = pl.pallas_call(
            functools.partial(_attn_kernel, inv_temperature=inv_t, masked=masked),
            out_shape=out_shapes,
            grid_spec=pltpu.PrefetchScalarGridSpec(
                num_scalar_prefetch=0,
                grid=(nbh, nq),
                in_specs=in_specs,
                out_specs=[o_spec, a_spec]),
            compiler_params=pltpu.CompilerParams(
                dimension_semantics=("parallel", "parallel"),
                vmem_limit_bytes=vmem_limit),
        )(*inputs)
        if Lq_pad != Lq:
            out = out[:, :Lq]
            attn = attn[:, :Lq]
        return out.reshape(B, H, Lq, D), attn.reshape(B, H, Lq, Lk)

    # ------------------------- flash path (no attn output) -------------------
    def step_bytes(G, tq, tk):
        b = G * (4 * tq * D * in_isz              # q + o, double-buffered
                 + 4 * tk * D * in_isz            # K + V, double-buffered
                 + tq * D * (4 + in_isz)          # acc f32 + scaled-q scratch
                 + 2 * tq * 4                     # m, l scratch
                 + 2 * tq * tk * 4)               # f32 scores + exp intermediate
        rows = 1 if mq == 1 else tq
        b += G * 2 * rows * tk * 2                # bias (conservative)
        return b

    tk_guess = min(kv_pref, Lk)
    tq = _choose_row_tile(Lq, q_pref, lambda t: step_bytes(1, t, tk_guess) <= budget)
    tk = _choose_kv_tile(Lk, kv_pref, lambda t: step_bytes(1, tq, t) <= budget)
    Lq_pad = _round_up(Lq, tq)
    Lk_pad = _round_up(Lk, tk)
    nq, nk = Lq_pad // tq, Lk_pad // tk
    G = _pick_group(BH, lambda g: step_bytes(g, tq, tk), budget,
                    cap=max(1, min(8, 512 // max(tq, 1))), parallel_rest=nq)
    nbh = BH // G

    qp = _pad_to(qf, 1, Lq_pad)
    kp = _pad_to(kf, 1, Lk_pad)
    vp = _pad_to(vf, 1, Lk_pad)

    flash_masked = masked or (Lk_pad != Lk)
    bmq = mq
    bp = None
    if flash_masked:
        if bias is None:
            bp = jnp.zeros((BH, 1, Lk), dtype=jnp.bfloat16)
            bmq = 1
        else:
            bp = bias
        if bmq != 1 and Lq_pad != Lq:
            bp = _pad_to(bp, 1, Lq_pad)
        if Lk_pad != Lk:
            bp = _pad_to(bp, 2, Lk_pad, value=NEG_INF)   # kill padded kv columns

    q_spec = pl.BlockSpec((G, tq, D), lambda b, qi, ki: (b, qi, 0))
    k_spec = pl.BlockSpec((G, tk, D), lambda b, qi, ki: (b, ki, 0))
    v_spec = pl.BlockSpec((G, tk, D), lambda b, qi, ki: (b, ki, 0))
    o_spec = pl.BlockSpec((G, tq, D), lambda b, qi, ki: (b, qi, 0))

    in_specs = [q_spec, k_spec, v_spec]
    inputs = [qp, kp, vp]
    if flash_masked:
        if bmq == 1:
            in_specs.append(pl.BlockSpec((G, 1, tk), lambda b, qi, ki: (b, 0, ki)))
        else:
            in_specs.append(pl.BlockSpec((G, tq, tk), lambda b, qi, ki: (b, qi, ki)))
        inputs.append(bp)

    out = pl.pallas_call(
        functools.partial(_flash_kernel, inv_temperature=inv_t,
                          masked=flash_masked, approx_recip=(in_isz < 4)),
        out_shape=jax.ShapeDtypeStruct((BH, Lq_pad, D), q.dtype),
        grid_spec=pltpu.PrefetchScalarGridSpec(
            num_scalar_prefetch=0,
            grid=(nbh, nq, nk),
            in_specs=in_specs,
            out_specs=o_spec,
            scratch_shapes=[
                pltpu.VMEM((G, tq, D), q.dtype),      # scaled q (resident across ki)
                pltpu.VMEM((G, tq, 1), jnp.float32),  # running max m
                pltpu.VMEM((G, tq, 1), jnp.float32),  # running sum l
                pltpu.VMEM((G, tq, D), jnp.float32),  # output accumulator
            ]),
        compiler_params=pltpu.CompilerParams(
            dimension_semantics=("parallel", "parallel", "arbitrary"),
            vmem_limit_bytes=vmem_limit),
    )(*inputs)
    if Lq_pad != Lq:
        out = out[:, :Lq]
    return out.reshape(B, H, Lq, D), None


# ---------------------------------------------------------------------------
# self-test
# ---------------------------------------------------------------------------
def _reference(q, k, v, temperature, mask=None):
    attn = jnp.einsum("bhqd,bhkd->bhqk", q / temperature, k)
    if mask is not None:
        attn = jnp.where(mask == 0, NEG_INF, attn)
    attn = jax.nn.softmax(attn, axis=-1)
    out = jnp.einsum("bhqk,bhkd->bhqd", attn, v)
    return out, attn


if __name__ == "__main__":
    # ---- small shape (module-typical tiny heads; exercises head packing) ----
    B, H, Lq, Lk, D = 2, 2, 8, 8, 32
    temperature = float(D) ** 0.5
    key = jax.random.PRNGKey(0)
    kq, kk, kv_, km = jax.random.split(key, 4)
    q = jax.random.normal(kq, (B, H, Lq, D), dtype=jnp.float32)
    k = jax.random.normal(kk, (B, H, Lk, D), dtype=jnp.float32)
    v = jax.random.normal(kv_, (B, H, Lk, D), dtype=jnp.float32)
    mask = (jax.random.uniform(km, (B, 1, 1, Lk)) > 0.2).astype(jnp.int32)

    out, attn = scaled_dot_product_attention(q, k, v, temperature)
    jax.block_until_ready((out, attn))
    r_out, r_attn = _reference(q, k, v, temperature)
    assert jnp.allclose(out, r_out, atol=2e-4, rtol=2e-4)
    assert jnp.allclose(attn, r_attn, atol=2e-4, rtol=2e-4)

    out_m, attn_m = scaled_dot_product_attention(q, k, v, temperature, mask=mask)
    jax.block_until_ready((out_m, attn_m))
    r_out_m, r_attn_m = _reference(q, k, v, temperature, mask=mask)
    assert jnp.allclose(out_m, r_out_m, atol=2e-4, rtol=2e-4)
    assert jnp.allclose(attn_m, r_attn_m, atol=2e-4, rtol=2e-4)

    out_f, attn_f = scaled_dot_product_attention(q, k, v, temperature, mask=mask,
                                                 return_attn=False)
    jax.block_until_ready(out_f)
    assert attn_f is None
    assert jnp.allclose(out_f, r_out_m, atol=2e-4, rtol=2e-4)

    # ---- larger shape: q tiling, full-Lk flash step, online softmax --------
    B2, H2, Lq2, Lk2, D2 = 2, 4, 512, 1024, 64
    temperature2 = float(D2) ** 0.5
    kq2, kk2, kv2, km2 = jax.random.split(jax.random.PRNGKey(1), 4)
    q2 = jax.random.normal(kq2, (B2, H2, Lq2, D2), dtype=jnp.float32)
    k2 = jax.random.normal(kk2, (B2, H2, Lk2, D2), dtype=jnp.float32)
    v2 = jax.random.normal(kv2, (B2, H2, Lk2, D2), dtype=jnp.float32)
    mask2 = (jax.random.uniform(km2, (B2, 1, 1, Lk2)) > 0.3).astype(jnp.int32)

    out2, attn2 = scaled_dot_product_attention(q2, k2, v2, temperature2, mask=mask2)
    jax.block_until_ready((out2, attn2))
    r_out2, r_attn2 = _reference(q2, k2, v2, temperature2, mask=mask2)
    assert jnp.allclose(out2, r_out2, atol=1e-3, rtol=1e-3)
    assert jnp.allclose(attn2, r_attn2, atol=1e-3, rtol=1e-3)

    out3, attn3 = scaled_dot_product_attention(q2, k2, v2, temperature2, mask=mask2,
                                               return_attn=False)
    jax.block_until_ready(out3)
    assert attn3 is None
    assert jnp.allclose(out3, r_out2, atol=1e-3, rtol=1e-3)

    # ---- awkward shape: exercises q padding, kv padding + padding bias -----
    B4, H4, Lq4, Lk4, D4 = 1, 2, 44, 200, 32
    temperature4 = float(D4) ** 0.5
    kq4, kk4, kv4, km4 = jax.random.split(jax.random.PRNGKey(2), 4)
    q4 = jax.random.normal(kq4, (B4, H4, Lq4, D4), dtype=jnp.float32)
    k4 = jax.random.normal(kk4, (B4, H4, Lk4, D4), dtype=jnp.float32)
    v4 = jax.random.normal(kv4, (B4, H4, Lk4, D4), dtype=jnp.float32)
    mask4 = (jax.random.uniform(km4, (B4, 1, 1, Lk4)) > 0.2).astype(jnp.int32)
    r_out4, r_attn4 = _reference(q4, k4, v4, temperature4, mask=mask4)
    r_out4n, _ = _reference(q4, k4, v4, temperature4)

    out4, attn4 = scaled_dot_product_attention(q4, k4, v4, temperature4, mask=mask4,
                                               q_tile=16)
    jax.block_until_ready((out4, attn4))
    assert jnp.allclose(out4, r_out4, atol=1e-3, rtol=1e-3)
    assert jnp.allclose(attn4, r_attn4, atol=1e-3, rtol=1e-3)

    out5, attn5 = scaled_dot_product_attention(q4, k4, v4, temperature4, mask=mask4,
                                               return_attn=False, q_tile=16, kv_tile=128)
    jax.block_until_ready(out5)
    assert attn5 is None
    assert jnp.allclose(out5, r_out4, atol=1e-3, rtol=1e-3)

    out6, _ = scaled_dot_product_attention(q4, k4, v4, temperature4,
                                           return_attn=False, q_tile=16, kv_tile=128)
    jax.block_until_ready(out6)
    assert jnp.allclose(out6, r_out4n, atol=1e-3, rtol=1e-3)

    print("KERNEL_OK")
</pallas_src>

<mosaic_0001>
module attributes {stable_mosaic.version = 11 : i64} {
  func.func @_attn_kernel(%arg0: i32, %arg1: i32, %arg2: memref<2x8x32xf32, #tpu.memory_space<vmem>>, %arg3: memref<2x8x32xf32, #tpu.memory_space<vmem>>, %arg4: memref<2x8x32xf32, #tpu.memory_space<vmem>>, %arg5: memref<2x8x32xf32, #tpu.memory_space<vmem>>, %arg6: memref<2x8x8xf32, #tpu.memory_space<vmem>>) attributes {dimension_semantics = [#tpu.dimension_semantics<parallel>, #tpu.dimension_semantics<parallel>], iteration_bounds = array<i64: 2, 1>, scalar_prefetch = 0 : i64, scratch_operands = 0 : i64, tpu.core_type = #tpu.core_type<tc>, window_params = [{transform_indices = @transform_0, window_bounds = array<i64: 2, 8, 32>}, {transform_indices = @transform_1, window_bounds = array<i64: 2, 8, 32>}, {transform_indices = @transform_2, window_bounds = array<i64: 2, 8, 32>}, {transform_indices = @transform_3, window_bounds = array<i64: 2, 8, 32>}, {transform_indices = @transform_4, window_bounds = array<i64: 2, 8, 8>}]} {
    %c0 = arith.constant 0 : index
    %c0_0 = arith.constant 0 : index
    %c0_1 = arith.constant 0 : index
    %0 = vector.load %arg2[%c0, %c0_0, %c0_1] : memref<2x8x32xf32, #tpu.memory_space<vmem>>, vector<2x8x32xf32>
    %cst = arith.constant 0.176776692 : f32
    %1 = vector.broadcast %cst : f32 to vector<2x8x32xf32>
    %2 = arith.mulf %0, %1 : vector<2x8x32xf32>
    %c0_2 = arith.constant 0 : index
    %c0_3 = arith.constant 0 : index
    %c0_4 = arith.constant 0 : index
    %3 = vector.load %arg3[%c0_2, %c0_3, %c0_4] : memref<2x8x32xf32, #tpu.memory_space<vmem>>, vector<2x8x32xf32>
    %cst_5 = arith.constant dense<0.000000e+00> : vector<2x8x8xf32>
    %4 = tpu.matmul %2, %3, %cst_5 {dimension_numbers = #tpu.dot_dimension_numbers<[2], [2], [1], [1], [0, 0, 0, 1, 1, 1], [0], [0]>} : vector<2x8x32xf32>, vector<2x8x32xf32>, vector<2x8x8xf32> -> vector<2x8x8xf32>
    %cst_6 = arith.constant dense<0xFF800000> : vector<2x8xf32>
    %5 = vector.multi_reduction <maximumf>, %4, %cst_6 [2] : vector<2x8x8xf32> to vector<2x8xf32>
    %6 = vector.shape_cast %5 : vector<2x8xf32> to vector<2x8x1xf32>
    %7 = vector.broadcast %6 : vector<2x8x1xf32> to vector<2x8x8xf32>
    %8 = arith.subf %4, %7 : vector<2x8x8xf32>
    %9 = math.exp %8 : vector<2x8x8xf32>
    %cst_7 = arith.constant dense<0.000000e+00> : vector<2x8xf32>
    %10 = vector.multi_reduction <add>, %9, %cst_7 [2] : vector<2x8x8xf32> to vector<2x8xf32>
    %11 = vector.shape_cast %10 : vector<2x8xf32> to vector<2x8x1xf32>
    %12 = vector.broadcast %11 : vector<2x8x1xf32> to vector<2x8x8xf32>
    %13 = arith.divf %9, %12 : vector<2x8x8xf32>
    %c0_8 = arith.constant 0 : index
    %c0_9 = arith.constant 0 : index
    %c0_10 = arith.constant 0 : index
    %14 = vector.load %arg4[%c0_8, %c0_9, %c0_10] : memref<2x8x32xf32, #tpu.memory_space<vmem>>, vector<2x8x32xf32>
    %cst_11 = arith.constant dense<0.000000e+00> : vector<2x8x32xf32>
    %15 = tpu.matmul %13, %14, %cst_11 {dimension_numbers = #tpu.dot_dimension_numbers<[2], [1], [1], [2], [0, 0, 0, 1, 1, 2], [0], [0]>} : vector<2x8x8xf32>, vector<2x8x32xf32>, vector<2x8x32xf32> -> vector<2x8x32xf32>
    %c0_12 = arith.constant 0 : index
    %c0_13 = arith.constant 0 : index
    %c0_14 = arith.constant 0 : index
    %16 = vector.load %arg5[%c0_12, %c0_13, %c0_14] : memref<2x8x32xf32, #tpu.memory_space<vmem>>, vector<2x8x32xf32>
    tpu.vector_store %arg5[%c0_12, %c0_13, %c0_14], %15 {strides = array<i32>} : memref<2x8x32xf32, #tpu.memory_space<vmem>>, vector<2x8x32xf32>,
    %c0_15 = arith.constant 0 : index
    %c0_16 = arith.constant 0 : index
    %c0_17 = arith.constant 0 : index
    %17 = vector.load %arg6[%c0_15, %c0_16, %c0_17] : memref<2x8x8xf32, #tpu.memory_space<vmem>>, vector<2x8x8xf32>
    tpu.vector_store %arg6[%c0_15, %c0_16, %c0_17], %13 {strides = array<i32>} : memref<2x8x8xf32, #tpu.memory_space<vmem>>, vector<2x8x8xf32>,
    return
  }
  func.func @transform_0(%arg0: i32, %arg1: i32) -> (i32, i32, i32) {
    %c0_i32 = arith.constant 0 : i32
    %c0_i32_0 = arith.constant 0 : i32
    return %arg0, %arg1, %c0_i32 : i32, i32, i32
  }
  func.func @transform_1(%arg0: i32, %arg1: i32) -> (i32, i32, i32) {
    %c0_i32 = arith.constant 0 : i32
    %c0_i32_0 = arith.constant 0 : i32
    %c0_i32_1 = arith.constant 0 : i32
    return %arg0, %c0_i32, %c0_i32_0 : i32, i32, i32
  }
  func.func @transform_2(%arg0: i32, %arg1: i32) -> (i32, i32, i32) {
    %c0_i32 = arith.constant 0 : i32
    %c0_i32_0 = arith.constant 0 : i32
    %c0_i32_1 = arith.constant 0 : i32
    return %arg0, %c0_i32, %c0_i32_0 : i32, i32, i32
  }
  func.func @transform_3(%arg0: i32, %arg1: i32) -> (i32, i32, i32) {
    %c0_i32 = arith.constant 0 : i32
    %c0_i32_0 = arith.constant 0 : i32
    return %arg0, %arg1, %c0_i32 : i32, i32, i32
  }
  func.func @transform_4(%arg0: i32, %arg1: i32) -> (i32, i32, i32) {
    %c0_i32 = arith.constant 0 : i32
    %c0_i32_0 = arith.constant 0 : i32
    return %arg0, %arg1, %c0_i32 : i32, i32, i32
  }
}

</mosaic_0001>

<llo_original>
// kernel: tpu_custom_call.1
$region0: #{tpu_custom_call.1}
  #allocation0 [shape = 'u32[]', space=smem, size = 0x4, offset = 0x4, fixed_abs, tag = 'smem constant byte address 0x4 - core index']
  #allocation1 [shape = 'u32[72,128]{1,0:T(1,128)}', space=vmem, size = 0x9000, scoped, tag = 'internal scratch']
  %s0 = inlined_call_operand.hbm [shape: f32[4,8,32], index: 0, kind: input, shape index: {}]
  %s1 = inlined_call_operand.hbm [shape: f32[4,8,32], index: 1, kind: input, shape index: {}]
  %s2 = inlined_call_operand.hbm [shape: f32[4,8,32], index: 2, kind: input, shape index: {}]
  %s3 = inlined_call_operand.hbm [shape: f32[4,8,32], index: 3, kind: output, shape index: {0}]
  %s4 = inlined_call_operand.hbm [shape: f32[4,8,8], index: 4, kind: output, shape index: {1}]
  %5 = xla_tuple %s3, %s4
  %s6 = sld [smem:[#allocation0]]
  $region65: #{tpu_custom_call.1} parent=0
    _
  %s8 = ssub.s32 1, %s6
  %s9 = scalar_select 0, %s8, %s6
  $region1: #{tpu_custom_call.1} parent=0
    #allocation2 [shape = 'u8[16384]{0}', space=vmem, size = 0x4000, scoped, tag = 'input window, operand 0']
    #allocation3 [shape = 's32[2]{0}', space=sflag, size = 0x8, scoped, tag = 'scoped memory for tpu_custom_call.1']
    #allocation4 [shape = 's32[2]{0}', space=sflag, size = 0x8, scoped, tag = 'scoped memory for tpu_custom_call.1']
    #allocation5 [shape = 'u8[16384]{0}', space=vmem, size = 0x4000, scoped, tag = 'input window, operand 1']
    #allocation6 [shape = 's32[2]{0}', space=sflag, size = 0x8, scoped, tag = 'scoped memory for tpu_custom_call.1']
    #allocation7 [shape = 'u8[16384]{0}', space=vmem, size = 0x4000, scoped, tag = 'input window, operand 2']
    #allocation8 [shape = 'u8[16384]{0}', space=vmem, size = 0x4000, scoped, tag = 'output window, operand 0']
    #allocation9 [shape = 'u8[16384]{0}', space=vmem, size = 0x4000, scoped, tag = 'output window, operand 1']
    #allocation10 [shape = 's32[2]{0}', space=sflag, size = 0x8, scoped, tag = 'scoped memory for tpu_custom_call.1']
    %10 = vsyncpa [#allocation3], 0
    %s11 = scalar_lea.sflag [#allocation3], 1
    %12 = vsyncpa %s11, 0
    %13 = vsyncpa [#allocation6], 0
    %s14 = scalar_lea.sflag [#allocation6], 1
    %15 = vsyncpa %s14, 0
    %16 = vsyncpa [#allocation4], 0
    %s17 = scalar_lea.sflag [#allocation4], 1
    %18 = vsyncpa %s17, 0
    %19 = vsyncpa [#allocation10], 0
    %s20 = scalar_lea.sflag [#allocation10], 1
    %21 = vsyncpa %s20, 0
    loop: start=0, step=1, limit=4
    $region2: #{tpu_custom_call.1} parent=1 // loop_pre_header
      _
    $region3: #{tpu_custom_call.1} parent=1 // loop_header
      %s23 = sphi 0, %s27
      %p24 = scmp.ge.s32.totalorder %s23, 4
      %s30 = sphi 0, %s42
      %s31 = sphi 0, %s38
      %s32 = sphi 0, %s30
      %s33 = sphi 0, %s31
      %s34 = sphi 0, %s32
      %s35 = sphi 0, %s33
      %s47 = sphi 0, %s49
      %s50 = sphi 0, %s47
      %s51 = sphi 0, %s50
      %s67 = sphi 0, %s51
      %s73 = sphi 0, %s75
      %s76 = sphi 0, %s73
      %s77 = sphi 0, %s76
      %s93 = sphi 0, %s77
      %s99 = sphi 0, %s101
      %s102 = sphi 0, %s99
      %s103 = sphi 0, %s102
      %s119 = sphi 0, %s103
      %s127 = sphi 0, %s129
      %s130 = sphi 0, %s127
      %s131 = sphi 0, %s130
      %s147 = sphi 0, %s131
      %s155 = sphi 0, %s157
      %s158 = sphi 0, %s155
      %s159 = sphi 0, %s158
      %s175 = sphi 0, %s159
    $region4: #{tpu_custom_call.1} parent=1 // loop_header_branch
      %26 = sbr.rel (%p24) target = $region8
    $region5: #{tpu_custom_call.1} parent=1 // loop_body
      %s28 = ssub.s32 %s23, 1
      %s29 = ssub.s32 %s23, 2
      %s36 = sadd.s32 1, %s31
      %p37 = scmp.ge.s32.totalorder %s36, 1
      %s38 = scalar_select %p37, 0, %s36
      %s39 = sadd.s32 1, %s30
      %s40 = scalar_select %p37, %s39, %s30
      %p41 = scmp.ge.s32.totalorder %s40, 2
      %s42 = scalar_select %p41, 0, %s40
      %s43 = ssub.s32 %s30, %s42
      %s44 = ssub.s32 %s31, %s38
      %s45 = sor.u32 %s43, %s44
      %p46 = scmp.eq.s32.totalorder %s45, 0
      %s48 = sadd.s32 %s47, 1
      %s49 = scalar_select %p46, %s47, %s48
      %p52 = pneg %p46
      %p53 = scmp.eq.s32.totalorder %s23, 1
      %p54 = por %p52, %p53
      %p55 = scmp.ne.s32.totalorder %s47, %s50
      %p56 = scmp.eq.s32.totalorder %s23, 0
      %p57 = por %p55, %p56
      %p58 = scmp.ne.s32.totalorder %s47, %s50
      %p59 = scmp.eq.s32.totalorder %s28, 1
      %p60 = por %p58, %p59
      %p61 = scmp.ne.s32.totalorder %s50, %s51
      %p62 = scmp.eq.s32.totalorder %s28, 0
      %p63 = por %p61, %p62
      %p64 = scmp.ne.s32.totalorder %s50, %s51
      %p65 = scmp.eq.s32.totalorder %s29, 1
      %p66 = por %p64, %p65
      %p68 = scmp.ne.s32.totalorder %s51, %s67
      %p69 = scmp.eq.s32.totalorder %s29, 0
      %p70 = por %p68, %p69
      %s71 = ssub.s32 %s30, %s42
      %p72 = scmp.eq.s32.totalorder %s71, 0
      %s74 = sadd.s32 %s73, 1
      %s75 = scalar_select %p72, %s73, %s74
      %p78 = pneg %p72
      %p79 = scmp.eq.s32.totalorder %s23, 1
      %p80 = por %p78, %p79
      %p81 = scmp.ne.s32.totalorder %s73, %s76
      %p82 = scmp.eq.s32.totalorder %s23, 0
      %p83 = por %p81, %p82
      %p84 = scmp.ne.s32.totalorder %s73, %s76
      %p85 = scmp.eq.s32.totalorder %s28, 1
      %p86 = por %p84, %p85
      %p87 = scmp.ne.s32.totalorder %s76, %s77
      %p88 = scmp.eq.s32.totalorder %s28, 0
      %p89 = por %p87, %p88
      %p90 = scmp.ne.s32.totalorder %s76, %s77
      %p91 = scmp.eq.s32.totalorder %s29, 1
      %p92 = por %p90, %p91
      %p94 = scmp.ne.s32.totalorder %s77, %s93
      %p95 = scmp.eq.s32.totalorder %s29, 0
      %p96 = por %p94, %p95
      %s97 = ssub.s32 %s30, %s42
      %p98 = scmp.eq.s32.totalorder %s97, 0
      %s100 = sadd.s32 %s99, 1
      %s101 = scalar_select %p98, %s99, %s100
      %p104 = pneg %p98
      %p105 = scmp.eq.s32.totalorder %s23, 1
      %p106 = por %p104, %p105
      %p107 = scmp.ne.s32.totalorder %s99, %s102
      %p108 = scmp.eq.s32.totalorder %s23, 0
      %p109 = por %p107, %p108
      %p110 = scmp.ne.s32.totalorder %s99, %s102
      %p111 = scmp.eq.s32.totalorder %s28, 1
      %p112 = por %p110, %p111
      %p113 = scmp.ne.s32.totalorder %s102, %s103
      %p114 = scmp.eq.s32.totalorder %s28, 0
      %p115 = por %p113, %p114
      %p116 = scmp.ne.s32.totalorder %s102, %s103
      %p117 = scmp.eq.s32.totalorder %s29, 1
      %p118 = por %p116, %p117
      %p120 = scmp.ne.s32.totalorder %s103, %s119
      %p121 = scmp.eq.s32.totalorder %s29, 0
      %p122 = por %p120, %p121
      %s123 = ssub.s32 %s30, %s42
      %s124 = ssub.s32 %s31, %s38
      %s125 = sor.u32 %s123, %s124
      %p126 = scmp.eq.s32.totalorder %s125, 0
      %s128 = sadd.s32 %s127, 1
      %s129 = scalar_select %p126, %s127, %s128
      %p132 = pneg %p126
      %p133 = scmp.eq.s32.totalorder %s23, 1
      %p134 = por %p132, %p133
      %p135 = scmp.ne.s32.totalorder %s127, %s130
      %p136 = scmp.eq.s32.totalorder %s23, 0
      %p137 = por %p135, %p136
      %p138 = scmp.ne.s32.totalorder %s127, %s130
      %p139 = scmp.eq.s32.totalorder %s28, 1
      %p140 = por %p138, %p139
      %p141 = scmp.ne.s32.totalorder %s130, %s131
      %p142 = scmp.eq.s32.totalorder %s28, 0
      %p143 = por %p141, %p142
      %p144 = scmp.ne.s32.totalorder %s130, %s131
      %p145 = scmp.eq.s32.totalorder %s29, 1
      %p146 = por %p144, %p145
      %p148 = scmp.ne.s32.totalorder %s131, %s147
      %p149 = scmp.eq.s32.totalorder %s29, 0
      %p150 = por %p148, %p149
      %s151 = ssub.s32 %s30, %s42
      %s152 = ssub.s32 %s31, %s38
      %s153 = sor.u32 %s151, %s152
      %p154 = scmp.eq.s32.totalorder %s153, 0
      %s156 = sadd.s32 %s155, 1
      %s157 = scalar_select %p154, %s155, %s156
      %p160 = pneg %p154
      %p161 = scmp.eq.s32.totalorder %s23, 1
      %p162 = por %p160, %p161
      %p163 = scmp.ne.s32.totalorder %s155, %s158
      %p164 = scmp.eq.s32.totalorder %s23, 0
      %p165 = por %p163, %p164
      %p166 = scmp.ne.s32.totalorder %s155, %s158
      %p167 = scmp.eq.s32.totalorder %s28, 1
      %p168 = por %p166, %p167
      %p169 = scmp.ne.s32.totalorder %s158, %s159
      %p170 = scmp.eq.s32.totalorder %s28, 0
      %p171 = por %p169, %p170
      %p172 = scmp.ne.s32.totalorder %s158, %s159
      %p173 = scmp.eq.s32.totalorder %s29, 1
      %p174 = por %p172, %p173
      %p176 = scmp.ne.s32.totalorder %s159, %s175
      %p177 = scmp.eq.s32.totalorder %s29, 0
      %p178 = por %p176, %p177
      %p179 = scmp.le.s32.totalorder 1, %s23
      %p180 = scmp.lt.s32.totalorder %s23, 3
      %p181 = pnand %p179, %p180
      %p182 = pneg %p181
      // Predicated region
      $region9: #{tpu_custom_call.1} parent=5 // pred_check
        _
      $region10: #{tpu_custom_call.1} parent=5 // pred_check_branch
        %184 = sbr.rel (%p181) target = $region12
      $region11: #{tpu_custom_call.1} parent=5 // pred_region
        %s185 = ssub.s32 %s23, 1
      $region12: #{tpu_custom_call.1} parent=5 // pred_fallthru
        _
      %p186 = scmp.lt.s32.totalorder %s23, 2
      // Predicated region
      $region13: #{tpu_custom_call.1} parent=5 // pred_check
        %p187 = pneg %p186
      $region14: #{tpu_custom_call.1} parent=5 // pred_check_branch
        %189 = sbr.rel (%p187) target = $region16
      $region15: #{tpu_custom_call.1} parent=5 // pred_region
        // Predicated region
        $region17: #{tpu_custom_call.1} parent=15 // pred_check
          %p190 = pneg %p57
        $region18: #{tpu_custom_call.1} parent=15 // pred_check_branch
          %192 = sbr.rel (%p190) target = $region20
        $region19: #{tpu_custom_call.1} parent=15 // pred_region
          %s193 = sand.u32 %s47, 1
          %s194 = scalar_lea.sflag [#allocation3], %s193
          %s195 = sand.u32 %s47, 1
          %s196 = smul.addr %s195, 16
          %s197 = scalar_lea.vmem [#allocation2], %s196
          %s198 = smul.u32 2, %s30
          %200 = vsyncadd %s194, 0
          %s201 = sadd.s32 %s31, %s198
          %s202 = smul.addr %s201, 8
          %s203 = scalar_lea.hbm %s0, %s202
          %s204 = sshll.u32 %s203, 4
          %s205 = int_to_ptr.hbm [resolvable:$true] %s204
          %s206 = sshll.u32 %s197, 4
          %s207 = int_to_ptr.vmem [resolvable:$true] %s206
          %212 = dma.hbm_to_vmem [thread:$0]  %s205, 256, %s207, %s194, 128, 128, 8
        $region20: #{tpu_custom_call.1} parent=15 // pred_fallthru
          _
        // Predicated region
        $region21: #{tpu_custom_call.1} parent=15 // pred_check
          %p213 = pneg %p83
        $region22: #{tpu_custom_call.1} parent=15 // pred_check_branch
          %215 = sbr.rel (%p213) target = $region24
        $region23: #{tpu_custom_call.1} parent=15 // pred_region
          %s216 = sand.u32 %s23, 1
          %s217 = scalar_lea.sflag [#allocation6], %s216
          %s218 = sand.u32 %s73, 1
          %s219 = smul.addr %s218, 16
          %s220 = scalar_lea.vmem [#allocation5], %s219
          %s221 = smul.u32 2, %s30
          %223 = vsyncadd %s217, 0
          %s224 = smul.addr %s221, 8
          %s225 = scalar_lea.hbm %s1, %s224
          %s226 = sshll.u32 %s225, 4
          %s227 = int_to_ptr.hbm [resolvable:$true] %s226
          %s228 = sshll.u32 %s220, 4
          %s229 = int_to_ptr.vmem [resolvable:$true] %s228
          %234 = dma.hbm_to_vmem [thread:$0]  %s227, 256, %s229, %s217, 128, 128, 8
        $region24: #{tpu_custom_call.1} parent=15 // pred_fallthru
          _
        // Predicated region
        $region25: #{tpu_custom_call.1} parent=15 // pred_check
          %p235 = pneg %p109
        $region26: #{tpu_custom_call.1} parent=15 // pred_check_branch
          %237 = sbr.rel (%p235) target = $region28
        $region27: #{tpu_custom_call.1} parent=15 // pred_region
          %s238 = sand.u32 %s23, 1
          %s239 = scalar_lea.sflag [#allocation6], %s238
          %s240 = sand.u32 %s99, 1
          %s241 = smul.addr %s240, 16
          %s242 = scalar_lea.vmem [#allocation7], %s241
          %s243 = smul.u32 2, %s30
          %245 = vsyncadd %s239, 0
          %s246 = smul.addr %s243, 8
          %s247 = scalar_lea.hbm %s2, %s246
          %s248 = sshll.u32 %s247, 4
          %s249 = int_to_ptr.hbm [resolvable:$true] %s248
          %s250 = sshll.u32 %s242, 4
          %s251 = int_to_ptr.vmem [resolvable:$true] %s250
          %256 = dma.hbm_to_vmem [thread:$0]  %s249, 256, %s251, %s239, 128, 128, 8
        $region28: #{tpu_custom_call.1} parent=15 // pred_fallthru
          _
      $region16: #{tpu_custom_call.1} parent=5 // pred_fallthru
        _
      %p257 = scmp.le.s32.totalorder 1, %s23
      %p258 = scmp.lt.s32.totalorder %s23, 3
      %p259 = pnand %p257, %p258
      %p260 = pneg %p259
      // Predicated region
      $region29: #{tpu_custom_call.1} parent=5 // pred_check
        _
      $region30: #{tpu_custom_call.1} parent=5 // pred_check_branch
        %262 = sbr.rel (%p259) target = $region32
      $region31: #{tpu_custom_call.1} parent=5 // pred_region
        %s263 = ssub.s32 %s23, 1
        %s264 = sand.u32 %s50, 1
        %s265 = scalar_lea.sflag [#allocation3], %s264
        %s266 = sand.u32 %s50, 1
        %s267 = smul.addr %s266, 16
        %s268 = scalar_lea.vmem [#allocation2], %s267
        // Predicated region
        $region33: #{tpu_custom_call.1} parent=31 // pred_check
          %p269 = pneg %p63
        $region34: #{tpu_custom_call.1} parent=31 // pred_check_branch
          %271 = sbr.rel (%p269) target = $region36
        $region35: #{tpu_custom_call.1} parent=31 // pred_region
          %273 = dma.done %s265, 256
        $region36: #{tpu_custom_call.1} parent=31 // pred_fallthru
          _
        %s274 = sand.u32 %s28, 1
        %s275 = scalar_lea.sflag [#allocation6], %s274
        %s276 = sand.u32 %s76, 1
        %s277 = smul.addr %s276, 16
        %s278 = scalar_lea.vmem [#allocation5], %s277
        // Predicated region
        $region37: #{tpu_custom_call.1} parent=31 // pred_check
          %p279 = pneg %p89
        $region38: #{tpu_custom_call.1} parent=31 // pred_check_branch
          %281 = sbr.rel (%p279) target = $region40
        $region39: #{tpu_custom_call.1} parent=31 // pred_region
          %283 = dma.done %s275, 256
        $region40: #{tpu_custom_call.1} parent=31 // pred_fallthru
          _
        %s284 = sand.u32 %s28, 1
        %s285 = scalar_lea.sflag [#allocation6], %s284
        %s286 = sand.u32 %s102, 1
        %s287 = smul.addr %s286, 16
        %s288 = scalar_lea.vmem [#allocation7], %s287
        // Predicated region
        $region41: #{tpu_custom_call.1} parent=31 // pred_check
          %p289 = pneg %p115
        $region42: #{tpu_custom_call.1} parent=31 // pred_check_branch
          %291 = sbr.rel (%p289) target = $region44
        $region43: #{tpu_custom_call.1} parent=31 // pred_region
          %293 = dma.done %s285, 256
        $region44: #{tpu_custom_call.1} parent=31 // pred_fallthru
          _
        %s294 = sand.u32 %s50, 1
        %s295 = scalar_lea.sflag [#allocation3], %s294
        %s296 = sand.u32 %s50, 1
        %s297 = smul.addr %s296, 16
        %s298 = scalar_lea.vmem [#allocation2], %s297
        %p299 = pneg %p63
        %p300 = pneg %p60
        %s301 = sand.u32 %s28, 1
        %s302 = scalar_lea.sflag [#allocation6], %s301
        %s303 = sand.u32 %s76, 1
        %s304 = smul.addr %s303, 16
        %s305 = scalar_lea.vmem [#allocation5], %s304
        %p306 = pneg %p89
        %p307 = pneg %p86
        %s308 = sand.u32 %s28, 1
        %s309 = scalar_lea.sflag [#allocation6], %s308
        %s310 = sand.u32 %s102, 1
        %s311 = smul.addr %s310, 16
        %s312 = scalar_lea.vmem [#allocation7], %s311
        %p313 = pneg %p115
        %p314 = pneg %p112
        %p315 = pneg %p143
        %p316 = pneg %p140
        %s317 = sand.u32 %s130, 1
        %s318 = scalar_lea.sflag [#allocation4], %s317
        %s319 = sand.u32 %s130, 1
        %s320 = smul.addr %s319, 16
        %s321 = scalar_lea.vmem [#allocation8], %s320
        %p322 = pneg %p171
        %p323 = pneg %p168
        %s324 = sand.u32 %s158, 1
        %s325 = scalar_lea.sflag [#allocation10], %s324
        %s326 = sand.u32 %s158, 1
        %s327 = smul.addr %s326, 16
        %s328 = scalar_lea.vmem [#allocation9], %s327
        %s329 = smul.u32 2, %s32
        %s330 = smul.u32 2, %s32
        %s331 = smul.u32 2, %s32
        %s332 = smul.u32 2, %s32
        %s333 = smul.u32 2, %s32
        %v334 = vld [vmem:[%s268] sm:$0xff]
        %v335 = vld [vmem:[%s268 + $0x8] sm:$0xff]
        %v336 = vmul.f32 %v334, 0.17677669
        %v337 = vmul.f32 %v335, 0.17677669
        %v338 = vld [vmem:[%s278] sm:$0xff]
        %v339 = vld [vmem:[%s278 + $0x8] sm:$0xff]
        %vm340 = vcmask 261120
        %v342 = vsel %vm340, %v336, 0
        %v345 = vsel %vm340, %v338, 0
        %347 = vmatpush.xpose.msra.mxu0 0.0
        %348 = vmatpush.xpose.msra.mxu0 0.0
        %349 = vmatpush.xpose.msra.mxu0 0.0
        %350 = vmatpush.xpose.msra.mxu0 0.0
        %351 = vmatpush.xpose.msra.mxu0 0.0
        %352 = vmatpush.xpose.msra.mxu0 0.0
        %353 = vmatpush.xpose.msra.mxu0 0.0
        %354 = vmatpush.xpose.msra.mxu0 0.0
        %355 = vmatpush.xpose.msra.mxu0 0.0
        %356 = vmatpush.xpose.msra.mxu0 0.0
        %357 = vmatpush.xpose.msra.mxu0 0.0
        %358 = vmatpush.xpose.msra.mxu0 0.0
        %359 = vmatpush.xpose.msra.mxu0 0.0
        %360 = vmatpush.xpose.msra.mxu0 0.0
        %361 = vmatpush.xpose.msra.mxu0 0.0
        %362 = vmatpush.xpose.msra.mxu0 %v345
        %363 = vmatmul.f32.gmra.mxu0 %v342
        %v364 = vpop.f32.mrf.mxu0
        %v365 = vadd.f32 0.0, %v364
        %366 = vdwg.mxu0
        %v368 = vsel %vm340, %v337, 0
        %v371 = vsel %vm340, %v339, 0
        %373 = vmatpush.xpose.msra.mxu0 0.0
        %374 = vmatpush.xpose.msra.mxu0 0.0
        %375 = vmatpush.xpose.msra.mxu0 0.0
        %376 = vmatpush.xpose.msra.mxu0 0.0
        %377 = vmatpush.xpose.msra.mxu0 0.0
        %378 = vmatpush.xpose.msra.mxu0 0.0
        %379 = vmatpush.xpose.msra.mxu0 0.0
        %380 = vmatpush.xpose.msra.mxu0 0.0
        %381 = vmatpush.xpose.msra.mxu0 0.0
        %382 = vmatpush.xpose.msra.mxu0 0.0
        %383 = vmatpush.xpose.msra.mxu0 0.0
        %384 = vmatpush.xpose.msra.mxu0 0.0
        %385 = vmatpush.xpose.msra.mxu0 0.0
        %386 = vmatpush.xpose.msra.mxu0 0.0
        %387 = vmatpush.xpose.msra.mxu0 0.0
        %388 = vmatpush.xpose.msra.mxu0 %v371
        %389 = vmatmul.f32.gmra.mxu0 %v368
        %v390 = vpop.f32.mrf.mxu0
        %v391 = vadd.f32 0.0, %v390
        %392 = vdwg.mxu0
        %vm393 = vcmask 64512
        %v394 = vsel %vm393, %v365, -inf
        %395 = vmax.xlane.f32.xlu0 %v394
        %v396 = vpop.xlane.xlu0 %395
        %v397 = vsel %vm393, %v391, -inf
        %398 = vmax.xlane.f32.xlu0 %v397
        %v399 = vpop.xlane.xlu0 %398
        %v400 = vsub.f32 %v365, %v396
        %v401 = vsub.f32 %v391, %v399
        %v402 = vmul.f32 %v400, 1.442695
        %v403 = vpow.pop %v402
        %v404 = vmul.f32 %v401, 1.442695
        %v405 = vpow.pop %v404
        %v406 = vsel %vm393, %v403, 0.0
        %407 = vadd.xlane.f32.xlu0 %v406
        %v408 = vpop.xlane.xlu0 %407
        %v409 = vsel %vm393, %v405, 0.0
        %410 = vadd.xlane.f32.xlu0 %v409
        %v411 = vpop.xlane.xlu0 %410
        %v412 = vrcp.pop %v408
        %v413 = vmul.f32 %v408, %v412
        %v414 = vsub.f32 1.0, %v413
        %v415 = vmul.f32 %v412, %v414
        %v416 = vadd.f32 %v412, %v415
        %vm417 = vweird.f32 %v408
        %vm418 = vweird.f32 %v412
        %vm419 = vmor %vm417, %vm418
        %v420 = vsel %vm419, %v412, %v416
        %v421 = vand.u32 2147483647, %v408
        %vm422 = vcmp.eq.f32.partialorder %v421, 8.507059e+37
        %v423 = vand.u32 %v408, 2147483648
        %v424 = vor.u32 1.1754944e-38, %v423
        %v425 = vsel %vm422, %v424, %v420
        %v426 = vmul.f32 %v403, %v425
        %v427 = vrcp.pop %v411
        %v428 = vmul.f32 %v411, %v427
        %v429 = vsub.f32 1.0, %v428
        %v430 = vmul.f32 %v427, %v429
        %v431 = vadd.f32 %v427, %v430
        %vm432 = vweird.f32 %v411
        %vm433 = vweird.f32 %v427
        %vm434 = vmor %vm432, %vm433
        %v435 = vsel %vm434, %v427, %v431
        %v436 = vand.u32 2147483647, %v411
        %vm437 = vcmp.eq.f32.partialorder %v436, 8.507059e+37
        %v438 = vand.u32 %v411, 2147483648
        %v439 = vor.u32 1.1754944e-38, %v438
        %v440 = vsel %vm437, %v439, %v435
        %v441 = vmul.f32 %v405, %v440
        %v442 = vld [vmem:[%s288] sm:$0xff]
        %v443 = vld [vmem:[%s288 + $0x8] sm:$0xff]
        %v445 = vsel %vm393, %v426, 0
        %447 = vmatpush.msra.mxu0 0.0
        %448 = vmatpush.msra.mxu0 0.0
        %449 = vmatpush.msra.mxu0 0.0
        %450 = vmatpush.msra.mxu0 0.0
        %451 = vmatpush.msra.mxu0 0.0
        %452 = vmatpush.msra.mxu0 0.0
        %453 = vmatpush.msra.mxu0 0.0
        %454 = vmatpush.msra.mxu0 0.0
        %455 = vmatpush.msra.mxu0 0.0
        %456 = vmatpush.msra.mxu0 0.0
        %457 = vmatpush.msra.mxu0 0.0
        %458 = vmatpush.msra.mxu0 0.0
        %459 = vmatpush.msra.mxu0 0.0
        %460 = vmatpush.msra.mxu0 0.0
        %461 = vmatpush.msra.mxu0 0.0
        %462 = vmatpush.msra.mxu0 %v442
        %463 = vmatmul.f32.gmra.mxu0 %v445
        %v464 = vpop.f32.mrf.mxu0
        %v465 = vadd.f32 0.0, %v464
        %466 = vdwg.mxu0
        %v468 = vsel %vm393, %v441, 0
        %470 = vmatpush.msra.mxu0 0.0
        %471 = vmatpush.msra.mxu0 0.0
        %472 = vmatpush.msra.mxu0 0.0
        %473 = vmatpush.msra.mxu0 0.0
        %474 = vmatpush.msra.mxu0 0.0
        %475 = vmatpush.msra.mxu0 0.0
        %476 = vmatpush.msra.mxu0 0.0
        %477 = vmatpush.msra.mxu0 0.0
        %478 = vmatpush.msra.mxu0 0.0
        %479 = vmatpush.msra.mxu0 0.0
        %480 = vmatpush.msra.mxu0 0.0
        %481 = vmatpush.msra.mxu0 0.0
        %482 = vmatpush.msra.mxu0 0.0
        %483 = vmatpush.msra.mxu0 0.0
        %484 = vmatpush.msra.mxu0 0.0
        %485 = vmatpush.msra.mxu0 %v443
        %486 = vmatmul.f32.gmra.mxu0 %v468
        %v487 = vpop.f32.mrf.mxu0
        %v488 = vadd.f32 0.0, %v487
        %489 = vdwg.mxu0
        %490 = vst.msk [vmem:[%s321] sm:$0xff] %vm340, %v465
        %491 = vst.msk [vmem:[%s321 + $0x8] sm:$0xff] %vm340, %v488
        %492 = vst.msk [vmem:[%s328] sm:$0xff] %vm393, %v426
        %493 = vst.msk [vmem:[%s328 + $0x8] sm:$0xff] %vm393, %v441
        %s494 = sand.u32 %s130, 1
        %s495 = scalar_lea.sflag [#allocation4], %s494
        %s496 = sand.u32 %s130, 1
        %s497 = smul.addr %s496, 16
        %s498 = scalar_lea.vmem [#allocation8], %s497
        %s499 = sand.u32 %s158, 1
        %s500 = scalar_lea.sflag [#allocation10], %s499
        %s501 = sand.u32 %s158, 1
        %s502 = smul.addr %s501, 16
        %s503 = scalar_lea.vmem [#allocation9], %s502
        // Predicated region
        $region45: #{tpu_custom_call.1} parent=31 // pred_check
          %p504 = pneg %p140
        $region46: #{tpu_custom_call.1} parent=31 // pred_check_branch
          %506 = sbr.rel (%p504) target = $region48
        $region47: #{tpu_custom_call.1} parent=31 // pred_region
          %s507 = smul.u32 2, %s32
          %509 = vsyncadd %s495, 0
          %s510 = sadd.s32 %s33, %s507
          %s511 = smul.addr %s510, 8
          %s512 = scalar_lea.hbm %s3, %s511
          %s513 = sshll.u32 %s498, 4
          %s514 = int_to_ptr.vmem [resolvable:$true] %s513
          %s515 = sshll.u32 %s512, 4
          %s516 = int_to_ptr.hbm [resolvable:$true] %s515
          %521 = dma.vmem_to_hbm [thread:$0]  %s514, 256, %s516, %s495, 128, 128, 8
        $region48: #{tpu_custom_call.1} parent=31 // pred_fallthru
          _
        // Predicated region
        $region49: #{tpu_custom_call.1} parent=31 // pred_check
          %p522 = pneg %p168
        $region50: #{tpu_custom_call.1} parent=31 // pred_check_branch
          %524 = sbr.rel (%p522) target = $region52
        $region51: #{tpu_custom_call.1} parent=31 // pred_region
          %s525 = smul.u32 2, %s32
          %527 = vsyncadd %s500, 0
          %s528 = sadd.s32 %s33, %s525
          %s529 = smul.addr %s528, 8
          %s530 = scalar_lea.hbm %s4, %s529
          %s531 = sshll.u32 %s503, 4
          %s532 = int_to_ptr.vmem [resolvable:$true] %s531
          %s533 = sshll.u32 %s530, 4
          %s534 = int_to_ptr.hbm [resolvable:$true] %s533
          %539 = dma.vmem_to_hbm [thread:$0]  %s532, 256, %s534, %s500, 128, 128, 8
        $region52: #{tpu_custom_call.1} parent=31 // pred_fallthru
          _
      $region32: #{tpu_custom_call.1} parent=5 // pred_fallthru
        _
      %p540 = scmp.le.s32.totalorder 2, %s23
      // Predicated region
      $region53: #{tpu_custom_call.1} parent=5 // pred_check
        %p541 = pneg %p540
      $region54: #{tpu_custom_call.1} parent=5 // pred_check_branch
        %543 = sbr.rel (%p541) target = $region56
      $region55: #{tpu_custom_call.1} parent=5 // pred_region
        %s544 = ssub.s32 %s23, 2
        // Predicated region
        $region57: #{tpu_custom_call.1} parent=55 // pred_check
          %p545 = pneg %p146
        $region58: #{tpu_custom_call.1} parent=55 // pred_check_branch
          %547 = sbr.rel (%p545) target = $region60
        $region59: #{tpu_custom_call.1} parent=55 // pred_region
          %s548 = sand.u32 %s131, 1
          %s549 = scalar_lea.sflag [#allocation4], %s548
          %s550 = sand.u32 %s131, 1
          %s551 = smul.addr %s550, 16
          %s552 = scalar_lea.vmem [#allocation8], %s551
          %554 = dma.done %s549, 256
        $region60: #{tpu_custom_call.1} parent=55 // pred_fallthru
          _
        // Predicated region
        $region61: #{tpu_custom_call.1} parent=55 // pred_check
          %p555 = pneg %p174
        $region62: #{tpu_custom_call.1} parent=55 // pred_check_branch
          %557 = sbr.rel (%p555) target = $region64
        $region63: #{tpu_custom_call.1} parent=55 // pred_region
          %s558 = sand.u32 %s159, 1
          %s559 = scalar_lea.sflag [#allocation10], %s558
          %s560 = sand.u32 %s159, 1
          %s561 = smul.addr %s560, 16
          %s562 = scalar_lea.vmem [#allocation9], %s561
          %564 = dma.done %s559, 256
        $region64: #{tpu_custom_call.1} parent=55 // pred_fallthru
          _
      $region56: #{tpu_custom_call.1} parent=5 // pred_fallthru
        _
    $region6: #{tpu_custom_call.1} parent=1 // loop_footer
      %s27 = sadd.s32 1, %s23
    $region7: #{tpu_custom_call.1} parent=1 // loop_footer_branch
      %22 = sbr.rel target = $region3
    $region8: #{tpu_custom_call.1} parent=1 // loop_exit
      _
    %565 = vsyncpa [#allocation3], 1
    %s566 = scalar_lea.sflag [#allocation3], 1
    %567 = vsyncpa %s566, 1
    %568 = vsyncpa [#allocation6], 1
    %s569 = scalar_lea.sflag [#allocation6], 1
    %570 = vsyncpa %s569, 1
    %571 = vsyncpa [#allocation4], 1
    %s572 = scalar_lea.sflag [#allocation4], 1
    %573 = vsyncpa %s572, 1
    %574 = vsyncpa [#allocation10], 1
    %s575 = scalar_lea.sflag [#allocation10], 1
    %576 = vsyncpa %s575, 1

</llo_original>
